<compile_context>
chip_gen: v5e
topology: v5e:2x2
jax: 0.10.0
libtpu: 0.0.40
codegen_flags: <defaults>
</compile_context>

<pallas_src>
import functools

import jax
import jax.numpy as jnp
from jax.experimental import pallas as pl
from jax.experimental.pallas import tpu as pltpu


# ---------------------------------------------------------------------------
# Tiling / device heuristics
# ---------------------------------------------------------------------------

def _round_up(n: int, m: int) -> int:
    return ((n + m - 1) // m) * m


def _device_kind() -> str:
    try:
        return jax.devices()[0].device_kind.lower()
    except Exception:
        return ""


def _default_row_tile() -> int:
    kind = _device_kind()
    if "v5" in kind:
        return 256       # v5e: ~240 FLOP/byte -> 256 rows already MXU-bound
    if "v7" in kind:
        return 512       # v7x: 64 MiB VMEM per TC -> cap row tile
    if "v6" in kind:
        return 1024      # v6e: needs ~650 FLOP/byte -> large row tile
    return 512


def _vmem_physical_cap() -> int:
    kind = _device_kind()
    if "v7" in kind:
        return 56 << 20  # 64 MiB/TC physical, leave headroom
    return 100 << 20     # v5e / v6e: 128 MiB physical


def _choose_inter_tiling(inter: int, target: int):
    """Pick a lane-aligned intermediate tile and the (zero-)padded I.

    Never falls back to an unbounded full-I tile for large I: instead pads I up
    to a multiple of the tile so the double-buffered weight tiles stay bounded.
    """
    if inter <= target:
        return inter, inter                    # single tile == full dim (legal)
    ti = max(128, (int(target) // 128) * 128)  # multiple of 128 (lane dim)
    return ti, _round_up(inter, ti)


# ---------------------------------------------------------------------------
# Kernel
# ---------------------------------------------------------------------------

def _gemma_mlp_kernel(x_ref, wgu_ref, wd_ref, o_ref, acc_ref, *, ti):
    # x_ref:   (tm, H)     input rows (resident across intermediate axis)
    # wgu_ref: (H, 2*ti)   fused [gate | up] weight tile, (in, out) layout
    # wd_ref:  (ti, H)     down_proj weight tile, (in, out) layout
    # o_ref:   (tm, H)     output rows (written once, last intermediate step)
    # acc_ref: (tm, H)     f32 accumulator scratch
    j = pl.program_id(1)

    x = x_ref[...]
    # One fused matmul for gate and up (single MXU stream / DMA per step).
    gu = jnp.dot(x, wgu_ref[...], preferred_element_type=jnp.float32)
    gate = gu[:, :ti]
    up = gu[:, ti:]
    # tanh-approx GELU (EUP) * up (VPU) — hidden under the MXU work.
    h = jax.nn.gelu(gate, approximate=True) * up
    partial = jnp.dot(h.astype(wd_ref.dtype), wd_ref[...],
                      preferred_element_type=jnp.float32)

    @pl.when(j == 0)
    def _():                       # direct write: no zero-store + read-add pass
        acc_ref[...] = partial

    @pl.when(j > 0)
    def _():
        acc_ref[...] += partial

    @pl.when(j == pl.num_programs(1) - 1)
    def _():
        o_ref[...] = acc_ref[...].astype(o_ref.dtype)


# ---------------------------------------------------------------------------
# Wrappers
# ---------------------------------------------------------------------------

def prepare_gemma_mlp_weights(wg: jax.Array,   # (I, H) gate_proj.weight
                              wu: jax.Array,   # (I, H) up_proj.weight
                              wd: jax.Array,   # (H, I) down_proj.weight
                              *,
                              inter_tile: int = 512):
    """One-time weight preprocessing. Call at load time, NOT per forward call.

    Returns (wgu, wd_t, ti):
      wgu : (H, 2*I_p)  tile-interleaved [gate_j | up_j] blocks, (in, out) layout
      wd_t: (I_p, H)    down_proj in (in, out) layout, rows zero-padded
      ti  : intermediate tile size used for the interleave
    """
    I, H = wg.shape
    assert wu.shape == (I, H) and wd.shape == (H, I)
    ti, I_p = _choose_inter_tiling(I, inter_tile)

    wg_t = wg.T            # (H, I)
    wu_t = wu.T            # (H, I)
    wd_t = wd.T            # (I, H)
    if I_p != I:           # zero-pad: gelu(0) * 0 == 0 -> no contribution
        wg_t = jnp.pad(wg_t, ((0, 0), (0, I_p - I)))
        wu_t = jnp.pad(wu_t, ((0, 0), (0, I_p - I)))
        wd_t = jnp.pad(wd_t, ((0, I_p - I), (0, 0)))

    n = I_p // ti
    # Interleave at tile granularity: columns [2*j*ti, 2*j*ti+ti) = gate tile j,
    # columns [2*j*ti+ti, 2*(j+1)*ti) = up tile j -> one contiguous DMA per step.
    wgu = jnp.stack([wg_t.reshape(H, n, ti), wu_t.reshape(H, n, ti)],
                    axis=2).reshape(H, 2 * I_p)
    return wgu, wd_t, ti


def gemma_mlp_prepared(x: jax.Array,
                       wgu: jax.Array,
                       wd_t: jax.Array,
                       ti: int,
                       *,
                       row_tile: int | None = None) -> jax.Array:
    """Forward pass using pre-processed weights. x: (..., H) -> (..., H)."""
    orig_shape = x.shape
    H = orig_shape[-1]
    I_p = wgu.shape[1] // 2
    assert wgu.shape == (H, 2 * I_p) and wd_t.shape == (I_p, H)
    assert I_p % ti == 0

    x2d = x.reshape(-1, H)
    rows = x2d.shape[0]

    if row_tile is None:
        row_tile = _default_row_tile()
    tm = min(row_tile, _round_up(rows, 16))        # sublane-aligned row tile
    rows_p = _round_up(rows, tm)
    if rows_p != rows:
        x2d = jnp.pad(x2d, ((0, rows_p - rows), (0, 0)))

    # Explicit scoped-VMEM budget from the real tile footprint (double-buffered
    # inputs/outputs + f32 accumulator), clamped to the device's physical VMEM.
    w_bytes = jnp.dtype(wgu.dtype).itemsize
    x_bytes = jnp.dtype(x.dtype).itemsize
    tile_footprint = (2 * (H * 2 * ti * w_bytes          # fused gate/up tile
                           + ti * H * w_bytes            # down tile
                           + tm * H * x_bytes            # x tile
                           + tm * H * x_bytes)           # out tile
                      + tm * H * 4)                      # f32 accumulator
    vmem_limit = int(min(max(tile_footprint * 5 // 4 + (4 << 20), 32 << 20),
                         _vmem_physical_cap()))

    n_row_tiles = rows_p // tm
    cost = pl.CostEstimate(
        flops=6 * rows_p * H * I_p,
        transcendentals=rows_p * I_p,
        bytes_accessed=(n_row_tiles * (2 * H * I_p + I_p * H) * w_bytes
                        + 2 * rows_p * H * x_bytes),
    )

    out = pl.pallas_call(
        functools.partial(_gemma_mlp_kernel, ti=ti),
        out_shape=jax.ShapeDtypeStruct((rows_p, H), x.dtype),
        grid_spec=pltpu.PrefetchScalarGridSpec(
            num_scalar_prefetch=0,
            grid=(n_row_tiles, I_p // ti),
            in_specs=[
                pl.BlockSpec((tm, H), lambda i, j: (i, 0)),       # x rows
                pl.BlockSpec((H, 2 * ti), lambda i, j: (0, j)),   # fused gate/up
                pl.BlockSpec((ti, H), lambda i, j: (j, 0)),       # down tile
            ],
            out_specs=pl.BlockSpec((tm, H), lambda i, j: (i, 0)),
            scratch_shapes=[pltpu.VMEM((tm, H), jnp.float32)],
        ),
        compiler_params=pltpu.CompilerParams(
            dimension_semantics=("parallel", "arbitrary"),
            vmem_limit_bytes=vmem_limit),
        cost_estimate=cost,
    )(x2d, wgu, wd_t)

    return out[:rows].reshape(orig_shape)


def gemma_mlp(x: jax.Array,
              wg: jax.Array,   # (I, H)  gate_proj.weight (PyTorch layout)
              wu: jax.Array,   # (I, H)  up_proj.weight
              wd: jax.Array,   # (H, I)  down_proj.weight
              *,
              row_tile: int | None = None,
              inter_tile: int = 512) -> jax.Array:
    """Convenience wrapper accepting PyTorch-layout weights.

    For production, call prepare_gemma_mlp_weights() once at load time and use
    gemma_mlp_prepared() per call so the transposes/interleave are amortized.
    """
    wgu, wd_t, ti = prepare_gemma_mlp_weights(wg, wu, wd, inter_tile=inter_tile)
    return gemma_mlp_prepared(x, wgu, wd_t, ti, row_tile=row_tile)


# ---------------------------------------------------------------------------
# Self-test
# ---------------------------------------------------------------------------

if __name__ == "__main__":
    # Small shapes consistent with the module: batch=2, seq=8, hidden=32,
    # intermediate=64.
    B, S, H, I = 2, 8, 32, 64
    key = jax.random.PRNGKey(0)
    kx, kg, ku, kd = jax.random.split(key, 4)

    x = jax.random.normal(kx, (B, S, H), dtype=jnp.bfloat16)
    # Weights in PyTorch nn.Linear layout (out_features, in_features),
    # scaled so activations stay O(1) in bf16.
    wg = (jax.random.normal(kg, (I, H)) / jnp.sqrt(H)).astype(jnp.bfloat16)
    wu = (jax.random.normal(ku, (I, H)) / jnp.sqrt(H)).astype(jnp.bfloat16)
    wd = (jax.random.normal(kd, (H, I)) / jnp.sqrt(I)).astype(jnp.bfloat16)

    out = gemma_mlp(x, wg, wu, wd)
    out = jax.block_until_ready(out)

    # Pure-JAX reference (same math as the PyTorch module, f32 accumulation).
    # The kernel casts the intermediate to bf16 before down_proj (bf16 module
    # semantics); tolerance is deliberately loose to cover that.
    xf = x.astype(jnp.float32)
    gate = xf @ wg.astype(jnp.float32).T
    up = xf @ wu.astype(jnp.float32).T
    href = jax.nn.gelu(gate, approximate=True) * up
    ref = (href @ wd.astype(jnp.float32).T).astype(x.dtype)

    assert out.shape == x.shape and out.dtype == x.dtype
    assert jnp.allclose(out.astype(jnp.float32), ref.astype(jnp.float32),
                        atol=5e-2, rtol=5e-2)

    print("KERNEL_OK")
</pallas_src>

<mosaic_0001>
module attributes {stable_mosaic.version = 11 : i64} {
  func.func @_gemma_mlp_kernel(%arg0: i32, %arg1: i32, %arg2: memref<16x32xbf16, #tpu.memory_space<vmem>>, %arg3: memref<32x128xbf16, #tpu.memory_space<vmem>>, %arg4: memref<64x32xbf16, #tpu.memory_space<vmem>>, %arg5: memref<16x32xbf16, #tpu.memory_space<vmem>>, %arg6: memref<16x32xf32, #tpu.memory_space<vmem>>) attributes {dimension_semantics = [#tpu.dimension_semantics<parallel>, #tpu.dimension_semantics<arbitrary>], iteration_bounds = array<i64: 1, 1>, scalar_prefetch = 0 : i64, scratch_operands = 1 : i64, tpu.core_type = #tpu.core_type<tc>, window_params = [{transform_indices = @transform_0, window_bounds = array<i64: 16, 32>}, {transform_indices = @transform_1, window_bounds = array<i64: 32, 128>}, {transform_indices = @transform_2, window_bounds = array<i64: 64, 32>}, {transform_indices = @transform_3, window_bounds = array<i64: 16, 32>}]} {
    %c0 = arith.constant 0 : index
    %c0_0 = arith.constant 0 : index
    %0 = vector.load %arg2[%c0, %c0_0] : memref<16x32xbf16, #tpu.memory_space<vmem>>, vector<16x32xbf16>
    %c0_1 = arith.constant 0 : index
    %c0_2 = arith.constant 0 : index
    %1 = vector.load %arg3[%c0_1, %c0_2] : memref<32x128xbf16, #tpu.memory_space<vmem>>, vector<32x128xbf16>
    %cst = arith.constant dense<0.000000e+00> : vector<16x128xf32>
    %2 = tpu.matmul %0, %1, %cst {dimension_numbers = #tpu.dot_dimension_numbers<[1], [0], [0], [1], [0, 0, 1, 1], [], []>} : vector<16x32xbf16>, vector<32x128xbf16>, vector<16x128xf32> -> vector<16x128xf32>
    %3 = vector.extract_strided_slice %2 {offsets = [0, 0], sizes = [16, 64], strides = [1, 1]} : vector<16x128xf32> to vector<16x64xf32>
    %4 = vector.extract_strided_slice %2 {offsets = [0, 64], sizes = [16, 64], strides = [1, 1]} : vector<16x128xf32> to vector<16x64xf32>
    %5 = arith.mulf %3, %3 : vector<16x64xf32>
    %6 = arith.mulf %3, %5 : vector<16x64xf32>
    %cst_3 = arith.constant 4.471500e-02 : f32
    %7 = vector.broadcast %cst_3 : f32 to vector<16x64xf32>
    %8 = arith.mulf %7, %6 : vector<16x64xf32>
    %9 = arith.addf %3, %8 : vector<16x64xf32>
    %cst_4 = arith.constant 0.797884583 : f32
    %10 = vector.broadcast %cst_4 : f32 to vector<16x64xf32>
    %11 = arith.mulf %10, %9 : vector<16x64xf32>
    %12 = math.tanh %11 : vector<16x64xf32>
    %cst_5 = arith.constant 1.000000e+00 : f32
    %13 = vector.broadcast %cst_5 : f32 to vector<16x64xf32>
    %14 = arith.addf %13, %12 : vector<16x64xf32>
    %cst_6 = arith.constant 5.000000e-01 : f32
    %15 = vector.broadcast %cst_6 : f32 to vector<16x64xf32>
    %16 = arith.mulf %15, %14 : vector<16x64xf32>
    %17 = arith.mulf %3, %16 : vector<16x64xf32>
    %18 = arith.mulf %17, %4 : vector<16x64xf32>
    %19 = arith.truncf %18 : vector<16x64xf32> to vector<16x64xbf16>
    %c0_7 = arith.constant 0 : index
    %c0_8 = arith.constant 0 : index
    %20 = vector.load %arg4[%c0_7, %c0_8] : memref<64x32xbf16, #tpu.memory_space<vmem>>, vector<64x32xbf16>
    %cst_9 = arith.constant dense<0.000000e+00> : vector<16x32xf32>
    %21 = tpu.matmul %19, %20, %cst_9 {dimension_numbers = #tpu.dot_dimension_numbers<[1], [0], [0], [1], [0, 0, 1, 1], [], []>} : vector<16x64xbf16>, vector<64x32xbf16>, vector<16x32xf32> -> vector<16x32xf32>
    %c0_i32 = arith.constant 0 : i32
    %22 = arith.cmpi eq, %arg1, %c0_i32 : i32
    %23 = arith.extui %22 : i1 to i32
    %c0_i32_10 = arith.constant 0 : i32
    %24 = arith.cmpi ne, %23, %c0_i32_10 : i32
    scf.if %24 {
      %c0_15 = arith.constant 0 : index
      %c0_16 = arith.constant 0 : index
      %31 = vector.load %arg6[%c0_15, %c0_16] : memref<16x32xf32, #tpu.memory_space<vmem>>, vector<16x32xf32>
      tpu.vector_store %arg6[%c0_15, %c0_16], %21 {strides = array<i32>} : memref<16x32xf32, #tpu.memory_space<vmem>>, vector<16x32xf32>,
    } else {
    }
    %c0_i32_11 = arith.constant 0 : i32
    %25 = arith.cmpi sgt, %arg1, %c0_i32_11 : i32
    %26 = arith.extui %25 : i1 to i32
    %c0_i32_12 = arith.constant 0 : i32
    %27 = arith.cmpi ne, %26, %c0_i32_12 : i32
    scf.if %27 {
      %c0_15 = arith.constant 0 : index
      %c0_16 = arith.constant 0 : index
      %31 = vector.load %arg6[%c0_15, %c0_16] : memref<16x32xf32, #tpu.memory_space<vmem>>, vector<16x32xf32>
      %32 = arith.addf %31, %21 : vector<16x32xf32>
      %c0_17 = arith.constant 0 : index
      %c0_18 = arith.constant 0 : index
      %33 = vector.load %arg6[%c0_17, %c0_18] : memref<16x32xf32, #tpu.memory_space<vmem>>, vector<16x32xf32>
      tpu.vector_store %arg6[%c0_17, %c0_18], %32 {strides = array<i32>} : memref<16x32xf32, #tpu.memory_space<vmem>>, vector<16x32xf32>,
    } else {
    }
    %c0_i32_13 = arith.constant 0 : i32
    %28 = arith.cmpi eq, %arg1, %c0_i32_13 : i32
    %29 = arith.extui %28 : i1 to i32
    %c0_i32_14 = arith.constant 0 : i32
    %30 = arith.cmpi ne, %29, %c0_i32_14 : i32
    scf.if %30 {
      %c0_15 = arith.constant 0 : index
      %c0_16 = arith.constant 0 : index
      %31 = vector.load %arg6[%c0_15, %c0_16] : memref<16x32xf32, #tpu.memory_space<vmem>>, vector<16x32xf32>
      %32 = arith.truncf %31 : vector<16x32xf32> to vector<16x32xbf16>
      %c0_17 = arith.constant 0 : index
      %c0_18 = arith.constant 0 : index
      %33 = vector.load %arg5[%c0_17, %c0_18] : memref<16x32xbf16, #tpu.memory_space<vmem>>, vector<16x32xbf16>
      tpu.vector_store %arg5[%c0_17, %c0_18], %32 {strides = array<i32>} : memref<16x32xbf16, #tpu.memory_space<vmem>>, vector<16x32xbf16>,
    } else {
    }
    return
  }
  func.func @transform_0(%arg0: i32, %arg1: i32) -> (i32, i32) {
    %c0_i32 = arith.constant 0 : i32
    %c0_i32_0 = arith.constant 0 : i32
    return %arg0, %c0_i32 : i32, i32
  }
  func.func @transform_1(%arg0: i32, %arg1: i32) -> (i32, i32) {
    %c0_i32 = arith.constant 0 : i32
    %c0_i32_0 = arith.constant 0 : i32
    return %c0_i32, %arg1 : i32, i32
  }
  func.func @transform_2(%arg0: i32, %arg1: i32) -> (i32, i32) {
    %c0_i32 = arith.constant 0 : i32
    %c0_i32_0 = arith.constant 0 : i32
    return %arg1, %c0_i32 : i32, i32
  }
  func.func @transform_3(%arg0: i32, %arg1: i32) -> (i32, i32) {
    %c0_i32 = arith.constant 0 : i32
    %c0_i32_0 = arith.constant 0 : i32
    return %arg0, %c0_i32 : i32, i32
  }
}

</mosaic_0001>

<llo_original>
// kernel: tpu_custom_call.1
$region0: #{tpu_custom_call.1}
  #allocation0 [shape = 'u32[]', space=smem, size = 0x4, offset = 0x4, fixed_abs, tag = 'smem constant byte address 0x4 - core index']
  #allocation1 [shape = 'u32[72,128]{1,0:T(1,128)}', space=vmem, size = 0x9000, scoped, tag = 'internal scratch']
  #allocation2 [shape = 'f32[16,32]{1,0:T(8,128)}', space=vmem, size = 0x2000, scoped, tag = 'scratch operand']
  %s0 = inlined_call_operand.vmem [shape: bf16[16,32], index: 0, kind: input, shape index: {}]
  %s1 = inlined_call_operand.vmem [shape: bf16[32,128], index: 1, kind: input, shape index: {}]
  %s2 = inlined_call_operand.vmem [shape: bf16[64,32], index: 2, kind: input, shape index: {}]
  %s3 = inlined_call_operand.hbm [shape: bf16[16,32], index: 3, kind: output, shape index: {}]
  %s4 = sld [smem:[#allocation0]]
  $region34: #{tpu_custom_call.1} parent=0
    _
  %s6 = ssub.s32 1, %s4
  %s7 = scalar_select 0, %s6, %s4
  $region1: #{tpu_custom_call.1} parent=0
    #allocation3 [shape = 'u8[4096]{0}', space=vmem, size = 0x1000, scoped, tag = 'output window, operand 0, single buffered']
    #allocation4 [shape = 's32[1]{0}', space=sflag, size = 0x4, scoped, tag = 'scoped memory for tpu_custom_call.1']
    %8 = vsyncpa [#allocation4], 0
    // Predicated region
    $region2: #{tpu_custom_call.1} parent=1 // pred_check
      _
    $region3: #{tpu_custom_call.1} parent=1 // pred_check_branch
      %10 = sbr.rel (0) target = $region5
    $region4: #{tpu_custom_call.1} parent=1 // pred_region
      _
    $region5: #{tpu_custom_call.1} parent=1 // pred_fallthru
      _
    // Predicated region
    $region6: #{tpu_custom_call.1} parent=1 // pred_check
      _
    $region7: #{tpu_custom_call.1} parent=1 // pred_check_branch
      %12 = sbr.rel (0) target = $region9
    $region8: #{tpu_custom_call.1} parent=1 // pred_region
      _
    $region9: #{tpu_custom_call.1} parent=1 // pred_fallthru
      _
    // Predicated region
    $region10: #{tpu_custom_call.1} parent=1 // pred_check
      _
    $region11: #{tpu_custom_call.1} parent=1 // pred_check_branch
      %14 = sbr.rel (0) target = $region13
    $region12: #{tpu_custom_call.1} parent=1 // pred_region
      _
    $region13: #{tpu_custom_call.1} parent=1 // pred_fallthru
      _
    %v16 = vld [vmem:[%s0] sm:$0xf]
    %v17 = vld [vmem:[%s0 + $0x4] sm:$0xf]
    %v18 = vld [vmem:[%s1] sm:$0xf]
    %v19 = vld [vmem:[%s1 + $0x4] sm:$0xf]
    %v20 = vld [vmem:[%s1 + $0x8] sm:$0xf]
    %v21 = vld [vmem:[%s1 + $0xc] sm:$0xf]
    %v24 = vunpack.c.l.b16 %v16
    %v25 = vunpack.c.l.b16 %v17
    %v26 = vpack.c.b16 %v25, %v24
    %v31 = vunpack.c.l.b16 %v18
    %v32 = vunpack.c.l.b16 %v19
    %v33 = vunpack.c.l.b16 %v20
    %v34 = vunpack.c.l.b16 %v21
    %v35 = vpack.c.b16 %v32, %v31
    %v36 = vpack.c.b16 %v34, %v33
    %vm39 = vcmask 261120
    %v41 = vsel %vm39, %v26, 0
    %43 = vmatpush.bf16.msra.mxu0 0
    %44 = vmatpush.bf16.msra.mxu0 0
    %45 = vmatpush.bf16.msra.mxu0 0
    %46 = vmatpush.bf16.msra.mxu0 0
    %47 = vmatpush.bf16.msra.mxu0 0
    %48 = vmatpush.bf16.msra.mxu0 0
    %49 = vmatpush.bf16.msra.mxu0 %v36
    %50 = vmatpush.bf16.msra.mxu0 %v35
    %51 = vmatmul.bf16.gmra.mxu0 %v41
    %v52 = vpop.f32.mrf.mxu0
    %v53 = vadd.f32 0.0, %v52
    %v54 = vpop.f32.mrf.mxu0
    %v55 = vadd.f32 0.0, %v54
    %56 = vdwg.mxu0
    %v57 = vmul.f32 %v53, %v53
    %v58 = vmul.f32 %v55, %v55
    %v59 = vmul.f32 %v53, %v57
    %v60 = vmul.f32 %v55, %v58
    %v61 = vmul.f32 %v59, 0.044715
    %v62 = vmul.f32 %v60, 0.044715
    %v63 = vadd.f32 %v53, %v61
    %v64 = vadd.f32 %v55, %v62
    %v65 = vmul.f32 %v63, 0.7978846
    %v66 = vmul.f32 %v64, 0.7978846
    %v67 = vtanh.pop %v65
    %v68 = vtanh.pop %v66
    %v69 = vadd.f32 %v67, 1.0
    %v70 = vadd.f32 %v68, 1.0
    %v71 = vmul.f32 %v69, 0.5
    %v72 = vmul.f32 %v70, 0.5
    %v73 = vmul.f32 %v53, %v71
    %v74 = vmul.f32 %v55, %v72
    %77 = vrot.lane.b32.xlu0 %v53, 64
    %v78 = vpop.permute.xlu0 %77
    %79 = vrot.lane.b32.xlu0 %v55, 64
    %v80 = vpop.permute.xlu0 %79
    %v83 = vmul.f32 %v73, %v78
    %v84 = vmul.f32 %v74, %v80
    %v85 = vpack.c.bf16 %v84, %v83
    %v86 = vld [vmem:[%s2] sm:$0xf]
    %v87 = vld [vmem:[%s2 + $0x4] sm:$0xf]
    %v88 = vld [vmem:[%s2 + $0x8] sm:$0xf]
    %v89 = vld [vmem:[%s2 + $0xc] sm:$0xf]
    %v90 = vld [vmem:[%s2 + $0x10] sm:$0xf]
    %v91 = vld [vmem:[%s2 + $0x14] sm:$0xf]
    %v92 = vld [vmem:[%s2 + $0x18] sm:$0xf]
    %v93 = vld [vmem:[%s2 + $0x1c] sm:$0xf]
    %v102 = vunpack.c.l.b16 %v86
    %v103 = vunpack.c.l.b16 %v87
    %v104 = vunpack.c.l.b16 %v88
    %v105 = vunpack.c.l.b16 %v89
    %v106 = vunpack.c.l.b16 %v90
    %v107 = vunpack.c.l.b16 %v91
    %v108 = vunpack.c.l.b16 %v92
    %v109 = vunpack.c.l.b16 %v93
    %v110 = vpack.c.b16 %v103, %v102
    %v111 = vpack.c.b16 %v105, %v104
    %v112 = vpack.c.b16 %v107, %v106
    %v113 = vpack.c.b16 %v109, %v108
    %vm118 = vcmask 523264
    %v120 = vsel %vm118, %v85, 0
    %122 = vmatpush.bf16.msra.mxu0 0
    %123 = vmatpush.bf16.msra.mxu0 0
    %124 = vmatpush.bf16.msra.mxu0 0
    %125 = vmatpush.bf16.msra.mxu0 0
    %126 = vmatpush.bf16.msra.mxu0 %v113
    %127 = vmatpush.bf16.msra.mxu0 %v112
    %128 = vmatpush.bf16.msra.mxu0 %v111
    %129 = vmatpush.bf16.msra.mxu0 %v110
    %130 = vmatmul.bf16.gmra.mxu0 %v120
    %v131 = vpop.f32.mrf.mxu0
    %v132 = vadd.f32 0.0, %v131
    %v133 = vpop.f32.mrf.mxu0
    %v134 = vadd.f32 0.0, %v133
    %135 = vdwg.mxu0
    %p136 = scmp.eq.s32.totalorder 0, 0
    // Predicated region
    $region14: #{tpu_custom_call.1} parent=1 // pred_check
      %p137 = pneg %p136
    $region15: #{tpu_custom_call.1} parent=1 // pred_check_branch
      %139 = sbr.rel (%p137) target = $region17
    $region16: #{tpu_custom_call.1} parent=1 // pred_region
      %140 = vst.msk [vmem:[#allocation2] sm:$0xff] %vm39, %v132
      %141 = vst.msk [vmem:[#allocation2 + $0x8] sm:$0xff] %vm39, %v134
    $region17: #{tpu_custom_call.1} parent=1 // pred_fallthru
      _
    %p142 = scmp.gt.s32.totalorder 0, 0
    // Predicated region
    $region18: #{tpu_custom_call.1} parent=1 // pred_check
      %p143 = pneg %p142
    $region19: #{tpu_custom_call.1} parent=1 // pred_check_branch
      %145 = sbr.rel (%p143) target = $region21
    $region20: #{tpu_custom_call.1} parent=1 // pred_region
      %v146 = vld [vmem:[#allocation2] sm:$0xff]
      %v147 = vld [vmem:[#allocation2 + $0x8] sm:$0xff]
      %v148 = vadd.f32 %v146, %v132
      %v149 = vadd.f32 %v147, %v134
      %150 = vst.msk [vmem:[#allocation2] sm:$0xff] %vm39, %v148
      %151 = vst.msk [vmem:[#allocation2 + $0x8] sm:$0xff] %vm39, %v149
    $region21: #{tpu_custom_call.1} parent=1 // pred_fallthru
      _
    // Predicated region
    $region22: #{tpu_custom_call.1} parent=1 // pred_check
      %p152 = pneg %p136
    $region23: #{tpu_custom_call.1} parent=1 // pred_check_branch
      %154 = sbr.rel (%p152) target = $region25
    $region24: #{tpu_custom_call.1} parent=1 // pred_region
      %v155 = vld [vmem:[#allocation2] sm:$0xff]
      %v156 = vld [vmem:[#allocation2 + $0x8] sm:$0xff]
      %v157 = vpack.c.bf16 %v155, %v155
      %v158 = vpack.c.bf16 %v156, %v156
      %vm159 = vcmask 257024
      %160 = vst.msk [vmem:[#allocation3] sm:$0xf] %vm159, %v157
      %161 = vst.msk [vmem:[#allocation3 + $0x4] sm:$0xf] %vm159, %v158
    $region25: #{tpu_custom_call.1} parent=1 // pred_fallthru
      _
    // Predicated region
    $region26: #{tpu_custom_call.1} parent=1 // pred_check
      _
    $region27: #{tpu_custom_call.1} parent=1 // pred_check_branch
      %163 = sbr.rel (0) target = $region29
    $region28: #{tpu_custom_call.1} parent=1 // pred_region
      %165 = vsyncadd [#allocation4], 0
      %s166 = sshll.u32 [#allocation3], 4
      %s167 = int_to_ptr.vmem [resolvable:$true] %s166
      %s168 = sshll.u32 %s3, 4
      %s169 = int_to_ptr.hbm [resolvable:$true] %s168
      %174 = dma.vmem_to_hbm [thread:$0]  %s167, 128, %s169, [#allocation4], 64, 64, 4
    $region29: #{tpu_custom_call.1} parent=1 // pred_fallthru
      _
    // Predicated region
    $region30: #{tpu_custom_call.1} parent=1 // pred_check
      _
    $region31: #{tpu_custom_call.1} parent=1 // pred_check_branch
      %176 = sbr.rel (0) target = $region33
    $region32: #{tpu_custom_call.1} parent=1 // pred_region
      %178 = dma.done [#allocation4], 128
    $region33: #{tpu_custom_call.1} parent=1 // pred_fallthru
      _
    %179 = vsyncpa [#allocation4], 1

</llo_original>
